<compile_context>
chip_gen: v7x
topology: tpu7x:2x2x1
jax: 0.10.0
libtpu: 0.0.40
codegen_flags: <defaults>
</compile_context>

<pallas_src>
import functools

import jax
import jax.numpy as jnp
from jax.experimental import pallas as pl
from jax.experimental.pallas import tpu as pltpu

_LANE = 128
_UNMASKED_TARGET_BYTES = 4 * 1024 * 1024   # ~4 MiB blocks: 1-4 MiB hits ~85% HBM roofline
_MASKED_TARGET_BYTES = 2 * 1024 * 1024     # leave VMEM room for mask buffers / in-kernel expand
_MIN_GRID_STEPS = 8                        # keep grid long enough for megacore + pipelining
_VMEM_LIMIT_BYTES = 32 * 1024 * 1024       # explicit scoped-VMEM limit (safe on v5e/v6e/v7x)


# ----------------------------- Pallas kernels --------------------------------
def _affine_kernel(z_ref, a_ref, c_ref, o_ref):
    """out = z * a + c   (a = exp(+/-scales), c = folded bias; see wrapper)."""
    z = z_ref[...].astype(jnp.float32)
    o_ref[...] = (z * a_ref[...] + c_ref[...]).astype(o_ref.dtype)


def _affine_mask_col_kernel(z_ref, a_ref, c_ref, m_ref, o_ref):
    """General layout: z block (tm, C); mask block (tm, 1) broadcast over lanes."""
    z = z_ref[...].astype(jnp.float32)
    out = z * a_ref[...] + c_ref[...]
    o_ref[...] = (out * m_ref[...]).astype(o_ref.dtype)


def _affine_mask_lane_kernel(z_ref, a_ref, c_ref, m_ref, o_ref, *, c_in):
    """Lane-packed layout: z block (tm, 128) holds 128//c_in original rows per
    vreg row; mask block (tm, reps) carries one value per original row.  The
    mask is expanded to (tm, 128) with a tiny MXU matmul (no in-kernel reshapes;
    the MXU slot is free filler in this memory-bound kernel)."""
    width = z_ref.shape[-1]
    reps = m_ref.shape[-1]
    lane = jax.lax.broadcasted_iota(jnp.int32, (reps, width), 1)
    grp = jax.lax.broadcasted_iota(jnp.int32, (reps, width), 0)
    expand = ((lane >= grp * c_in) & (lane < (grp + 1) * c_in)).astype(jnp.float32)
    m = jnp.dot(m_ref[...], expand, preferred_element_type=jnp.float32)
    z = z_ref[...].astype(jnp.float32)
    out = z * a_ref[...] + c_ref[...]
    o_ref[...] = (out * m).astype(o_ref.dtype)


# ----------------------------- tiling helpers ---------------------------------
def _choose_tm(rows, row_bytes_vmem, itemsize, target_bytes):
    """Rows per block: byte-budget driven, sublane aligned, and capped so large
    inputs keep >= _MIN_GRID_STEPS grid steps (megacore split / pipeline)."""
    sub = 16 if itemsize < 4 else 8
    if rows <= sub:
        return rows
    budget = max(sub, (target_bytes // max(row_bytes_vmem, 1)) // sub * sub)
    tm = min(rows, budget)
    if rows >= sub * _MIN_GRID_STEPS:
        cap = -(-rows // _MIN_GRID_STEPS)          # ceil(rows / steps)
        cap = -(-cap // sub) * sub                 # round up to sublane multiple
        tm = min(tm, cap)
    return max(sub, (tm // sub) * sub)


def _pallas_affine(z2d, a_row, c_row, mask2d, *, c_in, lane_packed, donate):
    """Apply out = z * a + c (+ optional mask) over a 2-D row-tiled grid."""
    rows, width = z2d.shape
    itemsize = jnp.dtype(z2d.dtype).itemsize
    padded_row_bytes = pl.cdiv(width, _LANE) * _LANE * itemsize   # VMEM footprint/row
    target = _MASKED_TARGET_BYTES if mask2d is not None else _UNMASKED_TARGET_BYTES
    tm = _choose_tm(rows, padded_row_bytes, itemsize, target)
    grid = (pl.cdiv(rows, tm),)

    z_spec = pl.BlockSpec((tm, width), lambda i: (i, 0))
    out_spec = pl.BlockSpec((tm, width), lambda i: (i, 0))
    vec_spec = pl.BlockSpec((1, width), lambda i: (0, 0))   # params stay VMEM resident

    flops = 2 * rows * width
    bytes_accessed = 2 * rows * width * itemsize + 2 * width * 4
    if mask2d is not None:
        flops += 3 * rows * width            # mask expand + multiply (advisory)
        bytes_accessed += mask2d.size * 4
    cost = pl.CostEstimate(flops=flops, transcendentals=0,
                           bytes_accessed=bytes_accessed)
    cparams = pltpu.CompilerParams(dimension_semantics=("parallel",),
                                   vmem_limit_bytes=_VMEM_LIMIT_BYTES)
    aliases = {0: 0} if donate else {}
    out_shape = jax.ShapeDtypeStruct((rows, width), z2d.dtype)

    if mask2d is None:
        return pl.pallas_call(
            _affine_kernel, out_shape=out_shape, grid=grid,
            in_specs=[z_spec, vec_spec, vec_spec], out_specs=out_spec,
            compiler_params=cparams, cost_estimate=cost,
            input_output_aliases=aliases,
        )(z2d, a_row, c_row)

    if lane_packed:
        m_spec = pl.BlockSpec((tm, mask2d.shape[1]), lambda i: (i, 0))
        kernel = functools.partial(_affine_mask_lane_kernel, c_in=c_in)
    else:
        m_spec = pl.BlockSpec((tm, 1), lambda i: (i, 0))
        kernel = _affine_mask_col_kernel
    return pl.pallas_call(
        kernel, out_shape=out_shape, grid=grid,
        in_specs=[z_spec, vec_spec, vec_spec, m_spec], out_specs=out_spec,
        compiler_params=cparams, cost_estimate=cost,
        input_output_aliases=aliases,
    )(z2d, a_row, c_row, mask2d)


# ----------------------------- ActNormFlow -----------------------------------
class ActNormFlow:
    """JAX/Pallas port of the PyTorch ActNormFlow forward pass."""

    def __init__(self, c_in, data_init=True, min_pallas_bytes=1 << 20):
        self.c_in = c_in
        self.data_init = data_init
        self.min_pallas_bytes = min_pallas_bytes   # below this, plain jnp is cheaper
        self.bias = jnp.zeros((1, 1, c_in), jnp.float32)
        self.scales = jnp.zeros((1, 1, c_in), jnp.float32)

    # TODO(synk): data_init_forward (one-off data-dependent parameter init) is a
    # plain-JAX reduction and is not ported to a Pallas kernel.

    def __call__(self, z, ldj=None, reverse=False, length=None,
                 channel_padding_mask=None, donate_z=False):
        B, S, C = z.shape
        if ldj is None:
            ldj = jnp.zeros((B,), jnp.float32)
        if length is None:
            if channel_padding_mask is None:
                length = jnp.full((B,), float(S), dtype=jnp.float32)
            else:
                length = channel_padding_mask.squeeze(axis=2).sum(axis=1)
        else:
            length = length.astype(jnp.float32)

        # log-det-jacobian: O(B + C) scalar math, kept in plain JAX.
        sign = -1.0 if reverse else 1.0
        ldj = ldj + sign * jnp.sum(self.scales) * length

        # Pre-exponentiate / fold the per-channel affine so the kernel is a
        # single fused multiply-add:  out = z * a + c   (then optional mask).
        scales_row = self.scales.reshape(1, C).astype(jnp.float32)
        bias_row = self.bias.reshape(1, C).astype(jnp.float32)
        if not reverse:
            a_row = jnp.exp(scales_row)            # (z + b) * e  ==  z*e + (b*e)
            c_row = bias_row * a_row
        else:
            a_row = jnp.exp(-scales_row)           # z * e^-1 - b
            c_row = -bias_row

        M = B * S
        itemsize = jnp.dtype(z.dtype).itemsize
        padded_row_bytes = pl.cdiv(C, _LANE) * _LANE * itemsize

        # Tiny-tensor / pathological-row bypass: launch + pipeline overhead (or
        # a single row blowing the VMEM budget) makes the kernel pointless.
        if (M * C * itemsize < self.min_pallas_bytes
                or padded_row_bytes * 8 * 4 > _VMEM_LIMIT_BYTES):
            out = z.astype(jnp.float32) * a_row.reshape(1, 1, C) + c_row.reshape(1, 1, C)
            if channel_padding_mask is not None:
                out = out * channel_padding_mask.astype(jnp.float32)
            return out.astype(z.dtype), ldj

        z2d = z.reshape(M, C)
        mask2d = None
        if channel_padding_mask is not None:
            mask2d = channel_padding_mask.reshape(M, 1).astype(jnp.float32)

        reps = _LANE // C if (C < _LANE and _LANE % C == 0) else 0
        if reps > 1 and M % reps == 0:
            # Lane-dense repack: view (M, C) as (M//reps, 128) (contiguous
            # reshape == bitcast) and tile the per-channel params to 128 lanes.
            rows = M // reps
            z_k = z2d.reshape(rows, _LANE)
            a_k = jnp.tile(a_row, (1, reps))
            c_k = jnp.tile(c_row, (1, reps))
            m_k = mask2d.reshape(rows, reps) if mask2d is not None else None
            out = _pallas_affine(z_k, a_k, c_k, m_k, c_in=C, lane_packed=True,
                                 donate=donate_z)
        else:
            # General path: full C as the lane dim (dense if C % 128 == 0).
            # TODO(synk): C that neither divides nor is a multiple of 128 (e.g.
            # 80) still uses a partially-masked lane layout; padding C to 128
            # in the wrapper would cost more HBM traffic than it saves here.
            out = _pallas_affine(z2d, a_row, c_row, mask2d, c_in=C,
                                 lane_packed=False, donate=donate_z)
        return out.reshape(B, S, C), ldj


# ----------------------------- tests -----------------------------------------
if __name__ == "__main__":
    key = jax.random.PRNGKey(0)
    keys = jax.random.split(key, 10)

    def ref_forward(bias, scales, z, ldj=None, reverse=False,
                    channel_padding_mask=None):
        B, S, C = z.shape
        if ldj is None:
            ldj = jnp.zeros((B,), jnp.float32)
        if channel_padding_mask is None:
            length = jnp.full((B,), float(S), jnp.float32)
        else:
            length = channel_padding_mask.squeeze(axis=2).sum(axis=1)
        zf = z.astype(jnp.float32)
        if not reverse:
            out = (zf + bias) * jnp.exp(scales)
            ldj = ldj + jnp.sum(scales) * length
        else:
            out = zf * jnp.exp(-scales) - bias
            ldj = ldj - jnp.sum(scales) * length
        if channel_padding_mask is not None:
            out = out * channel_padding_mask.astype(jnp.float32)
        return out.astype(z.dtype), ldj

    def run_and_check(flow, z, mask=None, atol=1e-5, rtol=1e-5):
        out, ldj = flow(z, channel_padding_mask=mask)
        out, ldj = jax.block_until_ready((out, ldj))
        out_r, ldj_r = ref_forward(flow.bias, flow.scales, z,
                                   channel_padding_mask=mask)
        assert out.shape == z.shape and out.dtype == z.dtype
        assert jnp.allclose(out.astype(jnp.float32), out_r.astype(jnp.float32),
                            atol=atol, rtol=rtol), "z mismatch"
        assert jnp.allclose(ldj, ldj_r, atol=atol, rtol=rtol), "ldj mismatch"
        assert not bool(jnp.isnan(out.astype(jnp.float32)).any())
        assert not bool(jnp.isnan(ldj).any())
        return out, ldj

    def make_flow(c_in, kb, ks):
        fl = ActNormFlow(c_in, min_pallas_bytes=0)     # force the Pallas path
        fl.bias = 0.5 * jax.random.normal(kb, (1, 1, c_in), jnp.float32)
        fl.scales = 0.3 * jax.random.normal(ks, (1, 1, c_in), jnp.float32)
        return fl

    # --- Test 1: C=4, no mask (lane-packed path) + invertibility w/ donation --
    flow4 = make_flow(4, keys[0], keys[1])
    z1 = jax.random.normal(keys[2], (2, 16, 4), jnp.float32)
    z1_out, ldj1 = run_and_check(flow4, z1)

    @functools.partial(jax.jit, donate_argnums=0)
    def rev4(zz, l):
        return flow4(zz, ldj=l, reverse=True, donate_z=True)

    z1_rec, ldj1_rec = jax.block_until_ready(rev4(z1_out, ldj1))
    assert jnp.allclose(z1_rec, z1, atol=1e-5, rtol=1e-5), "reverse did not invert z"
    assert jnp.allclose(ldj1_rec, jnp.zeros_like(ldj1_rec), atol=1e-4), "reverse ldj != 0"

    # --- Test 2: C=4 with padding mask (lane-packed masked kernel) ------------
    lengths = jnp.array([16, 9], jnp.int32)
    mask2 = (jnp.arange(16)[None, :] < lengths[:, None]).astype(jnp.float32)[..., None]
    z2 = jax.random.normal(keys[3], (2, 16, 4), jnp.float32)
    run_and_check(flow4, z2, mask=mask2)

    # --- Test 3: C=4, multi-block lane-packed masked path (grid ~ 8 steps) ----
    B3, S3 = 8, 1024
    z3 = jax.random.normal(keys[4], (B3, S3, 4), jnp.float32)
    len3 = jnp.array([S3, 700, 512, 33, S3, 1, 999, 250], jnp.int32)
    mask3 = (jnp.arange(S3)[None, :] < len3[:, None]).astype(jnp.float32)[..., None]
    run_and_check(flow4, z3, mask=mask3)

    # --- Test 4: C=128 (already lane-dense), multi-block, w/ and w/o mask -----
    flow128 = make_flow(128, keys[5], keys[6])
    z4 = jax.random.normal(keys[7], (4, 700, 128), jnp.float32)
    run_and_check(flow128, z4)
    len4 = jnp.array([700, 512, 33, 1], jnp.int32)
    mask4 = (jnp.arange(700)[None, :] < len4[:, None]).astype(jnp.float32)[..., None]
    run_and_check(flow128, z4, mask=mask4)

    # --- Test 5: awkward C (neither divides nor multiple of 128): general path
    flow12 = make_flow(12, keys[8], keys[9])
    z5 = jax.random.normal(keys[2], (2, 8, 12), jnp.float32)
    run_and_check(flow12, z5)
    mask5 = (jnp.arange(8)[None, :] < jnp.array([8, 5])[:, None]
             ).astype(jnp.float32)[..., None]
    run_and_check(flow12, z5, mask=mask5)

    # --- Test 6: bf16 activations (load bf16, compute f32, store bf16) --------
    z6 = jax.random.normal(keys[3], (2, 64, 128), jnp.float32).astype(jnp.bfloat16)
    run_and_check(flow128, z6, atol=3e-2, rtol=3e-2)

    print("KERNEL_OK")
</pallas_src>

<mosaic_0001>
module attributes {stable_mosaic.version = 11 : i64} {
  func.func @_affine_kernel(%arg0: i32, %arg1: memref<1x128xf32, #tpu.memory_space<vmem>>, %arg2: memref<1x128xf32, #tpu.memory_space<vmem>>, %arg3: memref<1x128xf32, #tpu.memory_space<vmem>>, %arg4: memref<1x128xf32, #tpu.memory_space<vmem>>) attributes {dimension_semantics = [#tpu.dimension_semantics<parallel>], iteration_bounds = array<i64: 1>, scalar_prefetch = 0 : i64, scratch_operands = 0 : i64, tpu.core_type = #tpu.core_type<tc>, window_params = [{transform_indices = @transform_0, window_bounds = array<i64: 1, 128>}, {pipeline_mode = #tpu.pipeline_mode<synchronous>, transform_indices = @transform_1, window_bounds = array<i64: 1, 128>}, {pipeline_mode = #tpu.pipeline_mode<synchronous>, transform_indices = @transform_2, window_bounds = array<i64: 1, 128>}, {transform_indices = @transform_3, window_bounds = array<i64: 1, 128>}]} {
    %c0 = arith.constant 0 : index
    %c0_0 = arith.constant 0 : index
    %0 = vector.load %arg1[%c0, %c0_0] : memref<1x128xf32, #tpu.memory_space<vmem>>, vector<1x128xf32>
    %c0_1 = arith.constant 0 : index
    %c0_2 = arith.constant 0 : index
    %1 = vector.load %arg2[%c0_1, %c0_2] : memref<1x128xf32, #tpu.memory_space<vmem>>, vector<1x128xf32>
    %2 = arith.mulf %0, %1 : vector<1x128xf32>
    %c0_3 = arith.constant 0 : index
    %c0_4 = arith.constant 0 : index
    %3 = vector.load %arg3[%c0_3, %c0_4] : memref<1x128xf32, #tpu.memory_space<vmem>>, vector<1x128xf32>
    %4 = arith.addf %2, %3 : vector<1x128xf32>
    %c0_5 = arith.constant 0 : index
    %c0_6 = arith.constant 0 : index
    %5 = vector.load %arg4[%c0_5, %c0_6] : memref<1x128xf32, #tpu.memory_space<vmem>>, vector<1x128xf32>
    tpu.vector_store %arg4[%c0_5, %c0_6], %4 {strides = array<i32>} : memref<1x128xf32, #tpu.memory_space<vmem>>, vector<1x128xf32>,
    return
  }
  func.func @transform_0(%arg0: i32) -> (i32, i32) {
    %c0_i32 = arith.constant 0 : i32
    %c0_i32_0 = arith.constant 0 : i32
    return %arg0, %c0_i32 : i32, i32
  }
  func.func @transform_1(%arg0: i32) -> (i32, i32) {
    %c0_i32 = arith.constant 0 : i32
    %c0_i32_0 = arith.constant 0 : i32
    %c0_i32_1 = arith.constant 0 : i32
    return %c0_i32, %c0_i32_0 : i32, i32
  }
  func.func @transform_2(%arg0: i32) -> (i32, i32) {
    %c0_i32 = arith.constant 0 : i32
    %c0_i32_0 = arith.constant 0 : i32
    %c0_i32_1 = arith.constant 0 : i32
    return %c0_i32, %c0_i32_0 : i32, i32
  }
  func.func @transform_3(%arg0: i32) -> (i32, i32) {
    %c0_i32 = arith.constant 0 : i32
    %c0_i32_0 = arith.constant 0 : i32
    return %arg0, %c0_i32 : i32, i32
  }
}

</mosaic_0001>

<llo_original>
// kernel: tpu_custom_call.1
$region0: #{tpu_custom_call.1}
  #allocation0 [shape = 'u32[]', space=smem, size = 0x4, offset = 0x4, fixed_abs, tag = 'smem constant byte address 0x4 - core index']
  #allocation1 [shape = 'u32[144,128]{1,0:T(1,128)}', space=vmem, size = 0x12000, scoped, tag = 'internal scratch']
  %s0 = inlined_call_operand.hbm [shape: f32[1,128], index: 0, kind: input, shape index: {}]
  %s1 = inlined_call_operand.vmem [shape: f32[1,128], index: 1, kind: input, shape index: {}]
  %s2 = inlined_call_operand.vmem [shape: f32[1,128], index: 2, kind: input, shape index: {}]
  %s3 = inlined_call_operand.hbm [shape: f32[1,128], index: 3, kind: output, shape index: {}]
  %s4 = sld [smem:[#allocation0]]
  $region26: #{tpu_custom_call.1} parent=0
    _
  %s6 = ssub.s32 1, %s4
  %s7 = scalar_select 0, %s6, %s4
  $region1: #{tpu_custom_call.1} parent=0
    #allocation2 [shape = 'u8[512]{0}', space=vmem, size = 0x400, scoped, tag = 'input window, operand 0, single buffered']
    #allocation3 [shape = 's32[1]{0}', space=sflag, size = 0x4, scoped, tag = 'scoped memory for tpu_custom_call.1']
    #allocation4 [shape = 's32[1]{0}', space=sflag, size = 0x4, scoped, tag = 'scoped memory for tpu_custom_call.1']
    #allocation5 [shape = 'u8[512]{0}', space=vmem, size = 0x400, scoped, tag = 'output window, operand 0, single buffered']
    %8 = vsyncpa [#allocation3], 0
    %9 = vsyncpa [#allocation4], 0
    // Predicated region
    $region2: #{tpu_custom_call.1} parent=1 // pred_check
      _
    $region3: #{tpu_custom_call.1} parent=1 // pred_check_branch
      %11 = sbr.rel (0) target = $region5
    $region4: #{tpu_custom_call.1} parent=1 // pred_region
      %s13 = ssub.s32 16, 16
      %14 = vsyncadd [#allocation3], %s13
      %s16 = sshll.u32 [#allocation2], 4
      %s17 = int_to_ptr.vmem [resolvable:$true] %s16
      %19 = dma.hbm_to_vmem [thread:$0]  %s0, 16, %s17, [#allocation3]
    $region5: #{tpu_custom_call.1} parent=1 // pred_fallthru
      _
    // Predicated region
    $region6: #{tpu_custom_call.1} parent=1 // pred_check
      _
    $region7: #{tpu_custom_call.1} parent=1 // pred_check_branch
      %21 = sbr.rel (0) target = $region9
    $region8: #{tpu_custom_call.1} parent=1 // pred_region
      _
    $region9: #{tpu_custom_call.1} parent=1 // pred_fallthru
      _
    // Predicated region
    $region10: #{tpu_custom_call.1} parent=1 // pred_check
      _
    $region11: #{tpu_custom_call.1} parent=1 // pred_check_branch
      %23 = sbr.rel (0) target = $region13
    $region12: #{tpu_custom_call.1} parent=1 // pred_region
      _
    $region13: #{tpu_custom_call.1} parent=1 // pred_fallthru
      _
    // Predicated region
    $region14: #{tpu_custom_call.1} parent=1 // pred_check
      _
    $region15: #{tpu_custom_call.1} parent=1 // pred_check_branch
      %25 = sbr.rel (0) target = $region17
    $region16: #{tpu_custom_call.1} parent=1 // pred_region
      %26 = dma.done [#allocation3], 16
    $region17: #{tpu_custom_call.1} parent=1 // pred_fallthru
      _
    %v27 = vld [vmem:[#allocation2] sm:$0x1]
    %v28 = vld [vmem:[%s1] sm:$0x1]
    %v29 = vmul.f32 %v27, %v28
    %v30 = vld [vmem:[%s2] sm:$0x1]
    %v31 = vadd.f32 %v29, %v30
    %32 = vst [vmem:[#allocation5] sm:$0x1] %v31
    // Predicated region
    $region18: #{tpu_custom_call.1} parent=1 // pred_check
      _
    $region19: #{tpu_custom_call.1} parent=1 // pred_check_branch
      %34 = sbr.rel (0) target = $region21
    $region20: #{tpu_custom_call.1} parent=1 // pred_region
      %s36 = ssub.s32 16, 16
      %37 = vsyncadd [#allocation4], %s36
      %s39 = sshll.u32 [#allocation5], 4
      %s40 = int_to_ptr.vmem [resolvable:$true] %s39
      %42 = dma.vmem_to_hbm [thread:$0]  %s40, 16, %s3, [#allocation4]
    $region21: #{tpu_custom_call.1} parent=1 // pred_fallthru
      _
    // Predicated region
    $region22: #{tpu_custom_call.1} parent=1 // pred_check
      _
    $region23: #{tpu_custom_call.1} parent=1 // pred_check_branch
      %44 = sbr.rel (0) target = $region25
    $region24: #{tpu_custom_call.1} parent=1 // pred_region
      %45 = dma.done [#allocation4], 16
    $region25: #{tpu_custom_call.1} parent=1 // pred_fallthru
      _
    %46 = vsyncpa [#allocation3], 1
    %47 = vsyncpa [#allocation4], 1

</llo_original>
